<compile_context>
chip_gen: v7x
topology: tpu7x:2x2x1
jax: 0.10.0
libtpu: 0.0.40
codegen_flags: <defaults>
</compile_context>

<pallas_src>
import functools

import jax
import jax.numpy as jnp
from jax.experimental import pallas as pl
from jax.experimental.pallas import tpu as pltpu

_NEG_CAP = -1e30  # finite "-inf": empty-segment rescales stay exp(0)=1, not NaN


def _pooling_kernel(num_hidden, b_pad, *refs):
    # refs: x, bidx_col, w_0..w_{H-1}, b_0..b_{H-1}, w_last_row, b_last,
    #       out (accumulator, [b_pad, D]), den_acc [1, b_pad], m_acc [1, b_pad]
    x_ref = refs[0]
    bidx_ref = refs[1]
    w_refs = refs[2:2 + num_hidden]
    b_refs = refs[2 + num_hidden:2 + 2 * num_hidden]
    wl_ref = refs[2 + 2 * num_hidden]           # [1, H] final-layer weight row (f32)
    bl_ref = refs[3 + 2 * num_hidden]           # [1, 1] final-layer bias (f32)
    out_ref = refs[4 + 2 * num_hidden]          # [b_pad, D] f32, resident accumulator
    den_ref = refs[5 + 2 * num_hidden]          # [1, b_pad] running sum of a
    m_ref = refs[6 + 2 * num_hidden]            # [1, b_pad] running per-segment max logit

    k = pl.program_id(0)

    @pl.when(k == 0)
    def _init():
        out_ref[...] = jnp.zeros_like(out_ref)
        den_ref[...] = jnp.zeros_like(den_ref)
        m_ref[...] = jnp.full_like(m_ref, _NEG_CAP)

    x = x_ref[...]                              # [tn, D] compute dtype (bf16 or f32)
    tn = x.shape[0]

    # ---- MLP: (Linear -> ReLU)* -> Linear(H, 1); f32 accumulation throughout ----
    h = x
    for i in range(num_hidden):
        h = jnp.dot(h, w_refs[i][...], preferred_element_type=jnp.float32)
        h = jnp.maximum(h + b_refs[i][...], 0.0)
        if i + 1 < num_hidden:
            h = h.astype(x.dtype)               # narrow only between hidden matmuls
    # Final H->1 layer as VPU multiply + lane reduce (no 1-wide MXU matmul).
    logit = (jnp.sum(h.astype(jnp.float32) * wl_ref[...], axis=-1, keepdims=True)
             + bl_ref[...])                     # [tn, 1] f32

    # ---- segment one-hot (nodes on sublanes, segments on lanes) ----
    bidx = bidx_ref[...]                                                  # [tn, 1] i32
    seg_ids = jax.lax.broadcasted_iota(jnp.int32, (tn, b_pad), 1)
    onehot_b = seg_ids == bidx                                            # [tn, b_pad]
    onehot = onehot_b.astype(jnp.float32)
    # Padded rows carry an out-of-range id, so their one-hot row is all zero and
    # they contribute nothing to any segment.

    # ---- online per-segment max (numerically stable exp) ----
    tile_max = jnp.max(jnp.where(onehot_b, logit, _NEG_CAP),
                       axis=0, keepdims=True)                             # [1, b_pad]
    m_old = m_ref[...]
    m_new = jnp.maximum(m_old, tile_max)
    alpha = jnp.exp(m_old - m_new)                                        # [1, b_pad]
    m_node = jnp.sum(onehot * m_new, axis=-1, keepdims=True)              # [tn, 1]
    a = jnp.exp(logit - m_node)                                           # [tn, 1] f32

    wts = onehot * a                                                      # [tn, b_pad] f32
    # Pooling matmul with x as the (non-transposed) RHS: result is [b_pad, D]
    # (features lane-dense); the operand with a dim-0 contraction is the narrow
    # weighted mask, not the full x tile.
    num_tile = jax.lax.dot_general(
        wts.astype(x.dtype), x,
        dimension_numbers=(((0,), (0,)), ((), ())),
        preferred_element_type=jnp.float32)                               # [b_pad, D]
    den_tile = jnp.sum(wts, axis=0, keepdims=True)                        # [1, b_pad]

    # Tiny [b_pad, b_pad] identity mask turns lane-oriented per-segment rows
    # into sublane-oriented columns (safe, a few vreg ops; b_pad is small).
    eye = (jax.lax.broadcasted_iota(jnp.int32, (b_pad, b_pad), 0)
           == jax.lax.broadcasted_iota(jnp.int32, (b_pad, b_pad), 1)
           ).astype(jnp.float32)
    alpha_col = jnp.sum(eye * alpha, axis=1, keepdims=True)               # [b_pad, 1]

    out_ref[...] = out_ref[...] * alpha_col + num_tile
    den_ref[...] = den_ref[...] * alpha + den_tile
    m_ref[...] = m_new

    @pl.when(k == pl.num_programs(0) - 1)
    def _finalize():
        den_col = jnp.sum(eye * den_ref[...], axis=1, keepdims=True)      # [b_pad, 1]
        # Empty segments (den == 0) produce NaN, matching the reference (0/0).
        out_ref[...] = out_ref[...] / den_col


def _round_up(v, m):
    return (v + m - 1) // m * m


def point_dense_pooling(x, batch_index, weights, biases, num_graphs, *,
                        block_n=1024, compute_dtype=jnp.bfloat16):
    """x: [N, D], batch_index: [N] int with values in [0, num_graphs).

    weights[i]: [in_i, out_i] (pre-transposed vs torch Linear), biases[i]: [1, out_i].
    Returns pooled features, shape [num_graphs, D] float32."""
    n, d = x.shape
    num_hidden = len(weights) - 1
    b_pad = _round_up(max(num_graphs, 1), 8)       # graphs padded to full sublanes

    hidden_ws = [w.astype(compute_dtype) for w in weights[:-1]]
    hidden_bs = [b.astype(jnp.float32) for b in biases[:-1]]
    w_last = weights[-1].astype(jnp.float32).reshape(1, -1)   # [H, 1] -> [1, H]
    b_last = biases[-1].astype(jnp.float32).reshape(1, 1)     # [1, 1]

    # ---- VMEM-budget-aware node tile (fits v5e/v6e/v7x scoped VMEM) ----
    elt = jnp.dtype(compute_dtype).itemsize
    vmem_budget = 28 * 1024 * 1024
    weight_bytes = sum(int(w.size) * w.dtype.itemsize for w in hidden_ws)
    weight_bytes += sum(int(b.size) * 4 for b in hidden_bs)
    weight_bytes += int(w_last.size) * 4 + 4
    acc_bytes = b_pad * _round_up(d, 128) * 4 + 2 * 4096
    x_row = _round_up(d, 128) * elt                 # VMEM bytes per x-tile row
    bidx_row = 512                                  # (tn, 1) i32 pads to a lane tile
    stream_row = 2 * (x_row + bidx_row)             # double-buffered streamed inputs
    avail = vmem_budget - 2 * weight_bytes - acc_bytes - (2 << 20)
    tn_cap = max(128, (max(avail, 0) // stream_row) // 128 * 128)
    tn = max(128, min(_round_up(block_n, 128), _round_up(n, 128), tn_cap))
    n_pad = _round_up(n, tn)

    x_p = x.astype(compute_dtype)
    bidx = batch_index.astype(jnp.int32)
    if n_pad != n:
        x_p = jnp.pad(x_p, ((0, n_pad - n), (0, 0)))
        # padded rows get an out-of-range id -> all-zero one-hot row
        bidx = jnp.pad(bidx, (0, n_pad - n), constant_values=b_pad)
    bidx_col = bidx.reshape(n_pad, 1)

    in_specs = [
        pl.BlockSpec((tn, d), lambda k: (k, 0)),     # x tile (streamed, double-buffered)
        pl.BlockSpec((tn, 1), lambda k: (k, 0)),     # batch-index tile
    ]
    for w in hidden_ws:                              # weights/biases stay VMEM-resident
        in_specs.append(pl.BlockSpec(w.shape, lambda k: (0, 0)))
    for b in hidden_bs:
        in_specs.append(pl.BlockSpec(b.shape, lambda k: (0, 0)))
    in_specs.append(pl.BlockSpec(w_last.shape, lambda k: (0, 0)))
    in_specs.append(pl.BlockSpec(b_last.shape, lambda k: (0, 0)))

    kernel = functools.partial(_pooling_kernel, num_hidden, b_pad)

    out = pl.pallas_call(
        kernel,
        out_shape=jax.ShapeDtypeStruct((b_pad, d), jnp.float32),
        grid=(n_pad // tn,),
        in_specs=in_specs,
        out_specs=pl.BlockSpec((b_pad, d), lambda k: (0, 0)),   # resident accumulator
        scratch_shapes=[
            pltpu.VMEM((1, b_pad), jnp.float32),    # running sum_{n in g} a_n
            pltpu.VMEM((1, b_pad), jnp.float32),    # running per-segment logit max
        ],
        compiler_params=pltpu.CompilerParams(
            dimension_semantics=("arbitrary",),     # N axis is a reduction
            vmem_limit_bytes=32 * 1024 * 1024),
    )(x_p, bidx_col, *hidden_ws, *hidden_bs, w_last, b_last)

    return out[:num_graphs]                          # drop the sublane padding rows


def init_params(hs, key):
    """Deterministic init mimicking nn.Linear (uniform +-1/sqrt(fan_in)).

    hs is the constructor arg; the module appends a final output dim of 1.
    Weights are returned as [in, out] (pre-transposed vs PyTorch's [out, in])."""
    dims = list(hs) + [1]
    weights, biases = [], []
    for i in range(len(dims) - 1):
        fan_in, fan_out = dims[i], dims[i + 1]
        key, kw, kb = jax.random.split(key, 3)
        bound = 1.0 / (fan_in ** 0.5)
        weights.append(jax.random.uniform(
            kw, (fan_in, fan_out), jnp.float32, -bound, bound))
        biases.append(jax.random.uniform(
            kb, (1, fan_out), jnp.float32, -bound, bound))
    return weights, biases


def reference(x, batch_index, weights, biases, num_graphs):
    h = x
    for i, (w, b) in enumerate(zip(weights, biases)):
        h = h @ w + b
        if i != len(weights) - 1:
            h = jnp.maximum(h, 0.0)
    a = jnp.exp(h)                                         # [N, 1]
    onehot = (jnp.arange(num_graphs)[:, None]
              == batch_index[None, :]).astype(jnp.float32)
    num = onehot @ (x * a)
    den = onehot @ a
    return num / den


if __name__ == "__main__":
    key = jax.random.PRNGKey(0)

    # Small shapes: 200 points, 32 features, hidden width 64, 4 graphs.
    hs = [32, 64]          # module builds MLP 32 -> 64 -> ReLU -> 1
    N, D, B = 200, hs[0], 4

    key, kx, kb = jax.random.split(key, 3)
    x = jax.random.normal(kx, (N, D), jnp.float32)
    batch_index = jax.random.randint(kb, (N,), 0, B, jnp.int32)

    weights, biases = init_params(hs, key)
    ref = reference(x, batch_index, weights, biases, B)

    # Exact-precision path (f32 streaming) must match the reference tightly.
    # block_n=128 with N=200 -> 2 grid steps: exercises tiling, padding and the
    # online cross-tile accumulation.
    out_f32 = point_dense_pooling(x, batch_index, weights, biases, B,
                                  block_n=128, compute_dtype=jnp.float32)
    out_f32 = jax.block_until_ready(out_f32)
    assert out_f32.shape == (B, D)
    assert jnp.allclose(out_f32, ref, atol=1e-4, rtol=1e-4), "f32 mismatch vs reference"

    # Default fast path (bf16 streaming, f32 accumulation): looser tolerance.
    out_bf16 = point_dense_pooling(x, batch_index, weights, biases, B, block_n=128)
    out_bf16 = jax.block_until_ready(out_bf16)
    assert out_bf16.shape == (B, D)
    assert jnp.allclose(out_bf16, ref, atol=2e-2, rtol=2e-2), "bf16 mismatch vs reference"

    print("KERNEL_OK")
</pallas_src>

<mosaic_0001>
module attributes {stable_mosaic.version = 11 : i64} {
  func.func @_pooling_kernel(%arg0: i32, %arg1: memref<128x32xf32, #tpu.memory_space<vmem>>, %arg2: memref<128x1xi32, #tpu.memory_space<vmem>>, %arg3: memref<32x64xf32, #tpu.memory_space<vmem>>, %arg4: memref<1x64xf32, #tpu.memory_space<vmem>>, %arg5: memref<1x64xf32, #tpu.memory_space<vmem>>, %arg6: memref<1x1xf32, #tpu.memory_space<vmem>>, %arg7: memref<8x32xf32, #tpu.memory_space<vmem>>, %arg8: memref<1x8xf32, #tpu.memory_space<vmem>>, %arg9: memref<1x8xf32, #tpu.memory_space<vmem>>) attributes {dimension_semantics = [#tpu.dimension_semantics<arbitrary>], iteration_bounds = array<i64: 2>, scalar_prefetch = 0 : i64, scratch_operands = 2 : i64, tpu.core_type = #tpu.core_type<tc>, window_params = [{transform_indices = @transform_0, window_bounds = array<i64: 128, 32>}, {transform_indices = @transform_1, window_bounds = array<i64: 128, 1>}, {pipeline_mode = #tpu.pipeline_mode<synchronous>, transform_indices = @transform_2, window_bounds = array<i64: 32, 64>}, {pipeline_mode = #tpu.pipeline_mode<synchronous>, transform_indices = @transform_3, window_bounds = array<i64: 1, 64>}, {pipeline_mode = #tpu.pipeline_mode<synchronous>, transform_indices = @transform_4, window_bounds = array<i64: 1, 64>}, {pipeline_mode = #tpu.pipeline_mode<synchronous>, transform_indices = @transform_5, window_bounds = array<i64: 1, 1>}, {pipeline_mode = #tpu.pipeline_mode<synchronous>, transform_indices = @transform_6, window_bounds = array<i64: 8, 32>}]} {
    %c0_i32 = arith.constant 0 : i32
    %0 = arith.cmpi eq, %arg0, %c0_i32 : i32
    %1 = arith.extui %0 : i1 to i32
    %c0_i32_0 = arith.constant 0 : i32
    %2 = arith.cmpi ne, %1, %c0_i32_0 : i32
    scf.if %2 {
      %cst_33 = arith.constant 0.000000e+00 : f32
      %68 = vector.broadcast %cst_33 : f32 to vector<8x32xf32>
      %c0_34 = arith.constant 0 : index
      %c0_35 = arith.constant 0 : index
      %69 = vector.load %arg7[%c0_34, %c0_35] : memref<8x32xf32, #tpu.memory_space<vmem>>, vector<8x32xf32>
      tpu.vector_store %arg7[%c0_34, %c0_35], %68 {strides = array<i32>} : memref<8x32xf32, #tpu.memory_space<vmem>>, vector<8x32xf32>,
      %cst_36 = arith.constant 0.000000e+00 : f32
      %70 = vector.broadcast %cst_36 : f32 to vector<1x8xf32>
      %c0_37 = arith.constant 0 : index
      %c0_38 = arith.constant 0 : index
      %71 = vector.load %arg8[%c0_37, %c0_38] : memref<1x8xf32, #tpu.memory_space<vmem>>, vector<1x8xf32>
      tpu.vector_store %arg8[%c0_37, %c0_38], %70 {strides = array<i32>} : memref<1x8xf32, #tpu.memory_space<vmem>>, vector<1x8xf32>,
      %cst_39 = arith.constant -1.000000e+30 : f32
      %72 = vector.broadcast %cst_39 : f32 to vector<1x8xf32>
      %c0_40 = arith.constant 0 : index
      %c0_41 = arith.constant 0 : index
      %73 = vector.load %arg9[%c0_40, %c0_41] : memref<1x8xf32, #tpu.memory_space<vmem>>, vector<1x8xf32>
      tpu.vector_store %arg9[%c0_40, %c0_41], %72 {strides = array<i32>} : memref<1x8xf32, #tpu.memory_space<vmem>>, vector<1x8xf32>,
    } else {
    }
    %c0 = arith.constant 0 : index
    %c0_1 = arith.constant 0 : index
    %3 = vector.load %arg1[%c0, %c0_1] : memref<128x32xf32, #tpu.memory_space<vmem>>, vector<128x32xf32>
    %c0_2 = arith.constant 0 : index
    %c0_3 = arith.constant 0 : index
    %4 = vector.load %arg3[%c0_2, %c0_3] : memref<32x64xf32, #tpu.memory_space<vmem>>, vector<32x64xf32>
    %cst = arith.constant dense<0.000000e+00> : vector<128x64xf32>
    %5 = tpu.matmul %3, %4, %cst {dimension_numbers = #tpu.dot_dimension_numbers<[1], [0], [0], [1], [0, 0, 1, 1], [], []>} : vector<128x32xf32>, vector<32x64xf32>, vector<128x64xf32> -> vector<128x64xf32>
    %c0_4 = arith.constant 0 : index
    %c0_5 = arith.constant 0 : index
    %6 = vector.load %arg4[%c0_4, %c0_5] : memref<1x64xf32, #tpu.memory_space<vmem>>, vector<1x64xf32>
    %7 = vector.broadcast %6 : vector<1x64xf32> to vector<128x64xf32>
    %8 = arith.addf %5, %7 : vector<128x64xf32>
    %cst_6 = arith.constant 0.000000e+00 : f32
    %9 = vector.broadcast %cst_6 : f32 to vector<128x64xf32>
    %10 = arith.maximumf %8, %9 : vector<128x64xf32>
    %c0_7 = arith.constant 0 : index
    %c0_8 = arith.constant 0 : index
    %11 = vector.load %arg5[%c0_7, %c0_8] : memref<1x64xf32, #tpu.memory_space<vmem>>, vector<1x64xf32>
    %12 = vector.broadcast %11 : vector<1x64xf32> to vector<128x64xf32>
    %13 = arith.mulf %10, %12 : vector<128x64xf32>
    %cst_9 = arith.constant dense<0.000000e+00> : vector<128xf32>
    %14 = vector.multi_reduction <add>, %13, %cst_9 [1] : vector<128x64xf32> to vector<128xf32>
    %15 = vector.shape_cast %14 : vector<128xf32> to vector<128x1xf32>
    %c0_10 = arith.constant 0 : index
    %c0_11 = arith.constant 0 : index
    %16 = vector.load %arg6[%c0_10, %c0_11] : memref<1x1xf32, #tpu.memory_space<vmem>>, vector<1x1xf32>
    %17 = vector.broadcast %16 : vector<1x1xf32> to vector<128x1xf32>
    %18 = arith.addf %15, %17 : vector<128x1xf32>
    %c0_12 = arith.constant 0 : index
    %c0_13 = arith.constant 0 : index
    %19 = vector.load %arg2[%c0_12, %c0_13] : memref<128x1xi32, #tpu.memory_space<vmem>>, vector<128x1xi32>
    %20 = tpu.iota {dimensions = array<i32: 1>} : vector<128x8xi32>
    %21 = vector.broadcast %19 : vector<128x1xi32> to vector<128x8xi32>
    %22 = arith.cmpi eq, %20, %21 : vector<128x8xi32>
    %23 = arith.extui %22 : vector<128x8xi1> to vector<128x8xi32>
    %24 = arith.sitofp %23 : vector<128x8xi32> to vector<128x8xf32>
    %cst_14 = arith.constant -1.000000e+30 : f32
    %25 = vector.shape_cast %18 : vector<128x1xf32> to vector<128x1xf32>
    %26 = vector.broadcast %25 : vector<128x1xf32> to vector<128x8xf32>
    %27 = vector.broadcast %cst_14 : f32 to vector<128x8xf32>
    %28 = arith.select %22, %26, %27 : vector<128x8xi1>, vector<128x8xf32>
    %cst_15 = arith.constant dense<0xFF800000> : vector<8xf32>
    %29 = vector.multi_reduction <maximumf>, %28, %cst_15 [0] : vector<128x8xf32> to vector<8xf32>
    %30 = vector.shape_cast %29 : vector<8xf32> to vector<1x8xf32>
    %c0_16 = arith.constant 0 : index
    %c0_17 = arith.constant 0 : index
    %31 = vector.load %arg9[%c0_16, %c0_17] : memref<1x8xf32, #tpu.memory_space<vmem>>, vector<1x8xf32>
    %32 = arith.maximumf %31, %30 : vector<1x8xf32>
    %33 = arith.subf %31, %32 : vector<1x8xf32>
    %34 = math.exp %33 : vector<1x8xf32>
    %35 = vector.broadcast %32 : vector<1x8xf32> to vector<128x8xf32>
    %36 = arith.mulf %24, %35 : vector<128x8xf32>
    %cst_18 = arith.constant dense<0.000000e+00> : vector<128xf32>
    %37 = vector.multi_reduction <add>, %36, %cst_18 [1] : vector<128x8xf32> to vector<128xf32>
    %38 = vector.shape_cast %37 : vector<128xf32> to vector<128x1xf32>
    %39 = arith.subf %18, %38 : vector<128x1xf32>
    %40 = math.exp %39 : vector<128x1xf32>
    %41 = vector.broadcast %40 : vector<128x1xf32> to vector<128x8xf32>
    %42 = arith.mulf %24, %41 : vector<128x8xf32>
    %cst_19 = arith.constant dense<0.000000e+00> : vector<8x32xf32>
    %43 = tpu.matmul %42, %3, %cst_19 {dimension_numbers = #tpu.dot_dimension_numbers<[0], [0], [1], [1], [0, 1, 1, 1], [], []>} : vector<128x8xf32>, vector<128x32xf32>, vector<8x32xf32> -> vector<8x32xf32>
    %cst_20 = arith.constant dense<0.000000e+00> : vector<8xf32>
    %44 = vector.multi_reduction <add>, %42, %cst_20 [0] : vector<128x8xf32> to vector<8xf32>
    %45 = vector.shape_cast %44 : vector<8xf32> to vector<1x8xf32>
    %46 = tpu.iota {dimensions = array<i32: 0>} : vector<8x8xi32>
    %47 = tpu.iota {dimensions = array<i32: 1>} : vector<8x8xi32>
    %48 = arith.cmpi eq, %46, %47 : vector<8x8xi32>
    %49 = arith.extui %48 : vector<8x8xi1> to vector<8x8xi32>
    %50 = arith.sitofp %49 : vector<8x8xi32> to vector<8x8xf32>
    %51 = vector.broadcast %34 : vector<1x8xf32> to vector<8x8xf32>
    %52 = arith.mulf %50, %51 : vector<8x8xf32>
    %cst_21 = arith.constant dense<0.000000e+00> : vector<8xf32>
    %53 = vector.multi_reduction <add>, %52, %cst_21 [1] : vector<8x8xf32> to vector<8xf32>
    %54 = vector.shape_cast %53 : vector<8xf32> to vector<8x1xf32>
    %c0_22 = arith.constant 0 : index
    %c0_23 = arith.constant 0 : index
    %55 = vector.load %arg7[%c0_22, %c0_23] : memref<8x32xf32, #tpu.memory_space<vmem>>, vector<8x32xf32>
    %56 = vector.broadcast %54 : vector<8x1xf32> to vector<8x32xf32>
    %57 = arith.mulf %55, %56 : vector<8x32xf32>
    %58 = arith.addf %57, %43 : vector<8x32xf32>
    %c0_24 = arith.constant 0 : index
    %c0_25 = arith.constant 0 : index
    %59 = vector.load %arg7[%c0_24, %c0_25] : memref<8x32xf32, #tpu.memory_space<vmem>>, vector<8x32xf32>
    tpu.vector_store %arg7[%c0_24, %c0_25], %58 {strides = array<i32>} : memref<8x32xf32, #tpu.memory_space<vmem>>, vector<8x32xf32>,
    %c0_26 = arith.constant 0 : index
    %c0_27 = arith.constant 0 : index
    %60 = vector.load %arg8[%c0_26, %c0_27] : memref<1x8xf32, #tpu.memory_space<vmem>>, vector<1x8xf32>
    %61 = arith.mulf %60, %34 : vector<1x8xf32>
    %62 = arith.addf %61, %45 : vector<1x8xf32>
    %c0_28 = arith.constant 0 : index
    %c0_29 = arith.constant 0 : index
    %63 = vector.load %arg8[%c0_28, %c0_29] : memref<1x8xf32, #tpu.memory_space<vmem>>, vector<1x8xf32>
    tpu.vector_store %arg8[%c0_28, %c0_29], %62 {strides = array<i32>} : memref<1x8xf32, #tpu.memory_space<vmem>>, vector<1x8xf32>,
    %c0_30 = arith.constant 0 : index
    %c0_31 = arith.constant 0 : index
    %64 = vector.load %arg9[%c0_30, %c0_31] : memref<1x8xf32, #tpu.memory_space<vmem>>, vector<1x8xf32>
    tpu.vector_store %arg9[%c0_30, %c0_31], %32 {strides = array<i32>} : memref<1x8xf32, #tpu.memory_space<vmem>>, vector<1x8xf32>,
    %c1_i32 = arith.constant 1 : i32
    %65 = arith.cmpi eq, %arg0, %c1_i32 : i32
    %66 = arith.extui %65 : i1 to i32
    %c0_i32_32 = arith.constant 0 : i32
    %67 = arith.cmpi ne, %66, %c0_i32_32 : i32
    scf.if %67 {
      %c0_33 = arith.constant 0 : index
      %c0_34 = arith.constant 0 : index
      %68 = vector.load %arg8[%c0_33, %c0_34] : memref<1x8xf32, #tpu.memory_space<vmem>>, vector<1x8xf32>
      %69 = vector.broadcast %68 : vector<1x8xf32> to vector<8x8xf32>
      %70 = arith.mulf %50, %69 : vector<8x8xf32>
      %cst_35 = arith.constant dense<0.000000e+00> : vector<8xf32>
      %71 = vector.multi_reduction <add>, %70, %cst_35 [1] : vector<8x8xf32> to vector<8xf32>
      %72 = vector.shape_cast %71 : vector<8xf32> to vector<8x1xf32>
      %c0_36 = arith.constant 0 : index
      %c0_37 = arith.constant 0 : index
      %73 = vector.load %arg7[%c0_36, %c0_37] : memref<8x32xf32, #tpu.memory_space<vmem>>, vector<8x32xf32>
      %74 = vector.broadcast %72 : vector<8x1xf32> to vector<8x32xf32>
      %75 = arith.divf %73, %74 : vector<8x32xf32>
      %c0_38 = arith.constant 0 : index
      %c0_39 = arith.constant 0 : index
      %76 = vector.load %arg7[%c0_38, %c0_39] : memref<8x32xf32, #tpu.memory_space<vmem>>, vector<8x32xf32>
      tpu.vector_store %arg7[%c0_38, %c0_39], %75 {strides = array<i32>} : memref<8x32xf32, #tpu.memory_space<vmem>>, vector<8x32xf32>,
    } else {
    }
    return
  }
  func.func @transform_0(%arg0: i32) -> (i32, i32) {
    %c0_i32 = arith.constant 0 : i32
    %c0_i32_0 = arith.constant 0 : i32
    return %arg0, %c0_i32 : i32, i32
  }
  func.func @transform_1(%arg0: i32) -> (i32, i32) {
    %c0_i32 = arith.constant 0 : i32
    %c0_i32_0 = arith.constant 0 : i32
    return %arg0, %c0_i32 : i32, i32
  }
  func.func @transform_2(%arg0: i32) -> (i32, i32) {
    %c0_i32 = arith.constant 0 : i32
    %c0_i32_0 = arith.constant 0 : i32
    %c0_i32_1 = arith.constant 0 : i32
    return %c0_i32, %c0_i32_0 : i32, i32
  }
  func.func @transform_3(%arg0: i32) -> (i32, i32) {
    %c0_i32 = arith.constant 0 : i32
    %c0_i32_0 = arith.constant 0 : i32
    %c0_i32_1 = arith.constant 0 : i32
    return %c0_i32, %c0_i32_0 : i32, i32
  }
  func.func @transform_4(%arg0: i32) -> (i32, i32) {
    %c0_i32 = arith.constant 0 : i32
    %c0_i32_0 = arith.constant 0 : i32
    %c0_i32_1 = arith.constant 0 : i32
    return %c0_i32, %c0_i32_0 : i32, i32
  }
  func.func @transform_5(%arg0: i32) -> (i32, i32) {
    %c0_i32 = arith.constant 0 : i32
    %c0_i32_0 = arith.constant 0 : i32
    %c0_i32_1 = arith.constant 0 : i32
    return %c0_i32, %c0_i32_0 : i32, i32
  }
  func.func @transform_6(%arg0: i32) -> (i32, i32) {
    %c0_i32 = arith.constant 0 : i32
    %c0_i32_0 = arith.constant 0 : i32
    %c0_i32_1 = arith.constant 0 : i32
    return %c0_i32, %c0_i32_0 : i32, i32
  }
}

</mosaic_0001>

<llo_original>
// kernel: tpu_custom_call.1
$region0: #{tpu_custom_call.1}
  #allocation0 [shape = 'u32[]', space=smem, size = 0x4, offset = 0x4, fixed_abs, tag = 'smem constant byte address 0x4 - core index']
  #allocation1 [shape = 'u32[144,128]{1,0:T(1,128)}', space=vmem, size = 0x12000, scoped, tag = 'internal scratch']
  #allocation2 [shape = 'f32[1,8]{1,0:T(1,128)}', space=vmem, size = 0x200, scoped, tag = 'scratch operand']
  #allocation3 [shape = 'f32[1,8]{1,0:T(1,128)}', space=vmem, size = 0x200, scoped, tag = 'scratch operand']
  #allocation4 [shape = 'f32[1,1]{1,0:T(1,128)S(1)}', space=vmem, size = 0x200, scoped, tag = 'scoped memory for tpu_custom_call.1']
  %s0 = inlined_call_operand.vmem [shape: f32[256,32], index: 0, kind: input, shape index: {}]
  %s1 = inlined_call_operand.vmem [shape: s32[256,1], index: 1, kind: input, shape index: {}]
  %s2 = inlined_call_operand.vmem [shape: f32[32,64], index: 2, kind: input, shape index: {}]
  %s3 = inlined_call_operand.vmem [shape: f32[1,64], index: 3, kind: input, shape index: {}]
  %s4 = inlined_call_operand.vmem [shape: f32[1,64], index: 4, kind: input, shape index: {}]
  %s5 = inlined_call_operand.<no memory space> [shape: f32[1,1], index: 5, kind: input, shape index: {}]
  %s6 = inlined_call_operand.hbm [shape: f32[8,32], index: 6, kind: output, shape index: {}]
  %s7 = sld [smem:[#allocation0]]
  $region65: #{tpu_custom_call.1} parent=0
    _
  %s9 = ssub.s32 1, %s7
  %s10 = scalar_select 0, %s9, %s7
  %v11 = vstv %s5
  %12 = vst [vmem:[#allocation4] sm:$0x1] %v11
  $region1: #{tpu_custom_call.1} parent=0
    #allocation5 [shape = 'u8[4096]{0}', space=vmem, size = 0x1000, scoped, tag = 'output window, operand 0, single buffered']
    #allocation6 [shape = 's32[2]{0}', space=sflag, size = 0x8, scoped, tag = 'scoped memory for tpu_custom_call.1']
    %13 = vsyncpa [#allocation6], 0
    loop: start=0, step=1, limit=4
    $region2: #{tpu_custom_call.1} parent=1 // loop_pre_header
      _
    $region3: #{tpu_custom_call.1} parent=1 // loop_header
      %s15 = sphi 0, %s19
      %p16 = scmp.ge.s32.totalorder %s15, 4
      %s25 = sphi 0, %s27
      %s28 = sphi 0, %s25
      %s29 = sphi 0, %s28
      %s45 = sphi 0, %s29
      %s51 = sphi 0, %s53
      %s54 = sphi 0, %s51
      %s55 = sphi 0, %s54
      %s71 = sphi 0, %s55
      %s75 = sphi 0, %s75
      %s77 = sphi 0, %s75
      %s78 = sphi 0, %s77
      %s92 = sphi 0, %s78
      %s96 = sphi 0, %s96
      %s98 = sphi 0, %s96
      %s99 = sphi 0, %s98
      %s113 = sphi 0, %s99
      %s117 = sphi 0, %s117
      %s119 = sphi 0, %s117
      %s120 = sphi 0, %s119
      %s134 = sphi 0, %s120
      %s138 = sphi 0, %s138
      %s140 = sphi 0, %s138
      %s141 = sphi 0, %s140
      %s155 = sphi 0, %s141
      %s159 = sphi 0, %s159
      %s161 = sphi 0, %s159
      %s162 = sphi 0, %s161
      %s176 = sphi 0, %s162
    $region4: #{tpu_custom_call.1} parent=1 // loop_header_branch
      %18 = sbr.rel (%p16) target = $region8
    $region5: #{tpu_custom_call.1} parent=1 // loop_body
      %s20 = ssub.s32 %s15, 1
      %s21 = ssub.s32 %s15, 2
      %s22 = sadd.s32 %s15, 1
      %s23 = ssub.s32 %s15, %s22
      %p24 = scmp.eq.s32.totalorder %s23, 0
      %s26 = sadd.s32 %s25, 1
      %s27 = scalar_select %p24, %s25, %s26
      %p30 = pneg %p24
      %p31 = scmp.eq.s32.totalorder %s15, 1
      %p32 = por %p30, %p31
      %p33 = scmp.ne.s32.totalorder %s25, %s28
      %p34 = scmp.eq.s32.totalorder %s15, 0
      %p35 = por %p33, %p34
      %p36 = scmp.ne.s32.totalorder %s25, %s28
      %p37 = scmp.eq.s32.totalorder %s20, 1
      %p38 = por %p36, %p37
      %p39 = scmp.ne.s32.totalorder %s28, %s29
      %p40 = scmp.eq.s32.totalorder %s20, 0
      %p41 = por %p39, %p40
      %p42 = scmp.ne.s32.totalorder %s28, %s29
      %p43 = scmp.eq.s32.totalorder %s21, 1
      %p44 = por %p42, %p43
      %p46 = scmp.ne.s32.totalorder %s29, %s45
      %p47 = scmp.eq.s32.totalorder %s21, 0
      %p48 = por %p46, %p47
      %s49 = ssub.s32 %s15, %s22
      %p50 = scmp.eq.s32.totalorder %s49, 0
      %s52 = sadd.s32 %s51, 1
      %s53 = scalar_select %p50, %s51, %s52
      %p56 = pneg %p50
      %p57 = scmp.eq.s32.totalorder %s15, 1
      %p58 = por %p56, %p57
      %p59 = scmp.ne.s32.totalorder %s51, %s54
      %p60 = scmp.eq.s32.totalorder %s15, 0
      %p61 = por %p59, %p60
      %p62 = scmp.ne.s32.totalorder %s51, %s54
      %p63 = scmp.eq.s32.totalorder %s20, 1
      %p64 = por %p62, %p63
      %p65 = scmp.ne.s32.totalorder %s54, %s55
      %p66 = scmp.eq.s32.totalorder %s20, 0
      %p67 = por %p65, %p66
      %p68 = scmp.ne.s32.totalorder %s54, %s55
      %p69 = scmp.eq.s32.totalorder %s21, 1
      %p70 = por %p68, %p69
      %p72 = scmp.ne.s32.totalorder %s55, %s71
      %p73 = scmp.eq.s32.totalorder %s21, 0
      %p74 = por %p72, %p73
      %s76 = sadd.s32 %s75, 1
      %p79 = scmp.eq.s32.totalorder %s15, 1
      %p80 = scmp.ne.s32.totalorder %s75, %s77
      %p81 = scmp.eq.s32.totalorder %s15, 0
      %p82 = por %p80, %p81
      %p83 = scmp.ne.s32.totalorder %s75, %s77
      %p84 = scmp.eq.s32.totalorder %s20, 1
      %p85 = por %p83, %p84
      %p86 = scmp.ne.s32.totalorder %s77, %s78
      %p87 = scmp.eq.s32.totalorder %s20, 0
      %p88 = por %p86, %p87
      %p89 = scmp.ne.s32.totalorder %s77, %s78
      %p90 = scmp.eq.s32.totalorder %s21, 1
      %p91 = por %p89, %p90
      %p93 = scmp.ne.s32.totalorder %s78, %s92
      %p94 = scmp.eq.s32.totalorder %s21, 0
      %p95 = por %p93, %p94
      %s97 = sadd.s32 %s96, 1
      %p100 = scmp.eq.s32.totalorder %s15, 1
      %p101 = scmp.ne.s32.totalorder %s96, %s98
      %p102 = scmp.eq.s32.totalorder %s15, 0
      %p103 = por %p101, %p102
      %p104 = scmp.ne.s32.totalorder %s96, %s98
      %p105 = scmp.eq.s32.totalorder %s20, 1
      %p106 = por %p104, %p105
      %p107 = scmp.ne.s32.totalorder %s98, %s99
      %p108 = scmp.eq.s32.totalorder %s20, 0
      %p109 = por %p107, %p108
      %p110 = scmp.ne.s32.totalorder %s98, %s99
      %p111 = scmp.eq.s32.totalorder %s21, 1
      %p112 = por %p110, %p111
      %p114 = scmp.ne.s32.totalorder %s99, %s113
      %p115 = scmp.eq.s32.totalorder %s21, 0
      %p116 = por %p114, %p115
      %s118 = sadd.s32 %s117, 1
      %p121 = scmp.eq.s32.totalorder %s15, 1
      %p122 = scmp.ne.s32.totalorder %s117, %s119
      %p123 = scmp.eq.s32.totalorder %s15, 0
      %p124 = por %p122, %p123
      %p125 = scmp.ne.s32.totalorder %s117, %s119
      %p126 = scmp.eq.s32.totalorder %s20, 1
      %p127 = por %p125, %p126
      %p128 = scmp.ne.s32.totalorder %s119, %s120
      %p129 = scmp.eq.s32.totalorder %s20, 0
      %p130 = por %p128, %p129
      %p131 = scmp.ne.s32.totalorder %s119, %s120
      %p132 = scmp.eq.s32.totalorder %s21, 1
      %p133 = por %p131, %p132
      %p135 = scmp.ne.s32.totalorder %s120, %s134
      %p136 = scmp.eq.s32.totalorder %s21, 0
      %p137 = por %p135, %p136
      %s139 = sadd.s32 %s138, 1
      %p142 = scmp.eq.s32.totalorder %s15, 1
      %p143 = scmp.ne.s32.totalorder %s138, %s140
      %p144 = scmp.eq.s32.totalorder %s15, 0
      %p145 = por %p143, %p144
      %p146 = scmp.ne.s32.totalorder %s138, %s140
      %p147 = scmp.eq.s32.totalorder %s20, 1
      %p148 = por %p146, %p147
      %p149 = scmp.ne.s32.totalorder %s140, %s141
      %p150 = scmp.eq.s32.totalorder %s20, 0
      %p151 = por %p149, %p150
      %p152 = scmp.ne.s32.totalorder %s140, %s141
      %p153 = scmp.eq.s32.totalorder %s21, 1
      %p154 = por %p152, %p153
      %p156 = scmp.ne.s32.totalorder %s141, %s155
      %p157 = scmp.eq.s32.totalorder %s21, 0
      %p158 = por %p156, %p157
      %s160 = sadd.s32 %s159, 1
      %p163 = scmp.eq.s32.totalorder %s15, 1
      %p164 = scmp.ne.s32.totalorder %s159, %s161
      %p165 = scmp.eq.s32.totalorder %s15, 0
      %p166 = por %p164, %p165
      %p167 = scmp.ne.s32.totalorder %s159, %s161
      %p168 = scmp.eq.s32.totalorder %s20, 1
      %p169 = por %p167, %p168
      %p170 = scmp.ne.s32.totalorder %s161, %s162
      %p171 = scmp.eq.s32.totalorder %s20, 0
      %p172 = por %p170, %p171
      %p173 = scmp.ne.s32.totalorder %s161, %s162
      %p174 = scmp.eq.s32.totalorder %s21, 1
      %p175 = por %p173, %p174
      %p177 = scmp.ne.s32.totalorder %s162, %s176
      %p178 = scmp.eq.s32.totalorder %s21, 0
      %p179 = por %p177, %p178
      %p180 = scmp.le.s32.totalorder 1, %s15
      %p181 = scmp.lt.s32.totalorder %s15, 3
      %p182 = pnand %p180, %p181
      %p183 = pneg %p182
      // Predicated region
      $region9: #{tpu_custom_call.1} parent=5 // pred_check
        _
      $region10: #{tpu_custom_call.1} parent=5 // pred_check_branch
        %185 = sbr.rel (%p182) target = $region12
      $region11: #{tpu_custom_call.1} parent=5 // pred_region
        %s186 = ssub.s32 %s15, 1
        // Predicated region
        $region13: #{tpu_custom_call.1} parent=11 // pred_check
          %p187 = pneg %p88
        $region14: #{tpu_custom_call.1} parent=11 // pred_check_branch
          %189 = sbr.rel (%p187) target = $region16
        $region15: #{tpu_custom_call.1} parent=11 // pred_region
          _
        $region16: #{tpu_custom_call.1} parent=11 // pred_fallthru
          _
        // Predicated region
        $region17: #{tpu_custom_call.1} parent=11 // pred_check
          %p190 = pneg %p109
        $region18: #{tpu_custom_call.1} parent=11 // pred_check_branch
          %192 = sbr.rel (%p190) target = $region20
        $region19: #{tpu_custom_call.1} parent=11 // pred_region
          _
        $region20: #{tpu_custom_call.1} parent=11 // pred_fallthru
          _
        // Predicated region
        $region21: #{tpu_custom_call.1} parent=11 // pred_check
          %p193 = pneg %p130
        $region22: #{tpu_custom_call.1} parent=11 // pred_check_branch
          %195 = sbr.rel (%p193) target = $region24
        $region23: #{tpu_custom_call.1} parent=11 // pred_region
          _
        $region24: #{tpu_custom_call.1} parent=11 // pred_fallthru
          _
        // Predicated region
        $region25: #{tpu_custom_call.1} parent=11 // pred_check
          %p196 = pneg %p151
        $region26: #{tpu_custom_call.1} parent=11 // pred_check_branch
          %198 = sbr.rel (%p196) target = $region28
        $region27: #{tpu_custom_call.1} parent=11 // pred_region
          _
        $region28: #{tpu_custom_call.1} parent=11 // pred_fallthru
          _
      $region12: #{tpu_custom_call.1} parent=5 // pred_fallthru
        _
      %p199 = scmp.lt.s32.totalorder %s15, 2
      // Predicated region
      $region29: #{tpu_custom_call.1} parent=5 // pred_check
        %p200 = pneg %p199
      $region30: #{tpu_custom_call.1} parent=5 // pred_check_branch
        %202 = sbr.rel (%p200) target = $region32
      $region31: #{tpu_custom_call.1} parent=5 // pred_region
        // Predicated region
        $region33: #{tpu_custom_call.1} parent=31 // pred_check
          %p203 = pneg %p35
        $region34: #{tpu_custom_call.1} parent=31 // pred_check_branch
          %205 = sbr.rel (%p203) target = $region36
        $region35: #{tpu_custom_call.1} parent=31 // pred_region
          %s206 = smul.u32 16, %s15
          %p207 = scmp.lt.s32.totalorder %s206, 31
          %s208 = scalar_select %p207, %s206, 31
          %s209 = smul.addr %s208, 8
          %s210 = scalar_lea.vmem %s0, %s209
          %s211 = smul.u32 16, %s15
        $region36: #{tpu_custom_call.1} parent=31 // pred_fallthru
          _
        // Predicated region
        $region37: #{tpu_custom_call.1} parent=31 // pred_check
          %p212 = pneg %p61
        $region38: #{tpu_custom_call.1} parent=31 // pred_check_branch
          %214 = sbr.rel (%p212) target = $region40
        $region39: #{tpu_custom_call.1} parent=31 // pred_region
          %s215 = smul.u32 16, %s15
          %p216 = scmp.lt.s32.totalorder %s215, 31
          %s217 = scalar_select %p216, %s215, 31
          %s218 = smul.addr %s217, 8
          %s219 = scalar_lea.vmem %s1, %s218
          %s220 = smul.u32 16, %s15
        $region40: #{tpu_custom_call.1} parent=31 // pred_fallthru
          _
      $region32: #{tpu_custom_call.1} parent=5 // pred_fallthru
        _
      %p221 = scmp.le.s32.totalorder 1, %s15
      %p222 = scmp.lt.s32.totalorder %s15, 3
      %p223 = pnand %p221, %p222
      %p224 = pneg %p223
      // Predicated region
      $region41: #{tpu_custom_call.1} parent=5 // pred_check
        _
      $region42: #{tpu_custom_call.1} parent=5 // pred_check_branch
        %226 = sbr.rel (%p223) target = $region44
      $region43: #{tpu_custom_call.1} parent=5 // pred_region
        %s227 = ssub.s32 %s15, 1
        %s228 = smul.u32 16, %s20
        %p229 = scmp.lt.s32.totalorder %s228, 31
        %s230 = scalar_select %p229, %s228, 31
        %s231 = smul.addr %s230, 8
        %s232 = scalar_lea.vmem %s0, %s231
        %p233 = pneg %p41
        %p234 = pneg %p38
        %s235 = smul.u32 16, %s20
        %p236 = scmp.lt.s32.totalorder %s235, 31
        %s237 = scalar_select %p236, %s235, 31
        %s238 = smul.addr %s237, 8
        %s239 = scalar_lea.vmem %s1, %s238
        %p240 = pneg %p67
        %p241 = pneg %p64
        %p242 = pneg %p88
        %p243 = pneg %p85
        %p244 = pneg %p109
        %p245 = pneg %p106
        %p246 = pneg %p130
        %p247 = pneg %p127
        %p248 = pneg %p151
        %p249 = pneg %p148
        %p250 = pneg %p172
        %p251 = pneg %p169
        %s252 = smul.u32 16, %s20
        %p253 = scmp.lt.s32.totalorder %s252, 31
        %s254 = scalar_select %p253, %s252, 31
        %s255 = smul.addr %s254, 8
        %s256 = scalar_lea.vmem %s0, %s255
        %s257 = smul.u32 16, %s20
        %s258 = smul.u32 16, %s20
        %p259 = scmp.lt.s32.totalorder %s258, 31
        %s260 = scalar_select %p259, %s258, 31
        %s261 = smul.addr %s260, 8
        %s262 = scalar_lea.vmem %s1, %s261
        %s263 = smul.u32 16, %s20
        %p264 = scmp.eq.s32.totalorder %s20, 0
        // Predicated region
        $region45: #{tpu_custom_call.1} parent=43 // pred_check
          %p265 = pneg %p264
        $region46: #{tpu_custom_call.1} parent=43 // pred_check_branch
          %267 = sbr.rel (%p265) target = $region48
        $region47: #{tpu_custom_call.1} parent=43 // pred_region
          %vm268 = vcmask 261120
          %269 = vst.msk [vmem:[#allocation5] sm:$0xff] %vm268, 0.0
          %vm270 = vcmask 57344
          %271 = vst.msk [vmem:[#allocation2] sm:$0x1] %vm270, 0.0
          %272 = vst.msk [vmem:[#allocation3] sm:$0x1] %vm270, -1e+30
        $region48: #{tpu_custom_call.1} parent=43 // pred_fallthru
          _
        %v273 = vld [vmem:[%s256] sm:$0xff]
        %v274 = vld [vmem:[%s256 + $0x8] sm:$0xff]
        %v275 = vld [vmem:[%s256 + $0x10] sm:$0xff]
        %v276 = vld [vmem:[%s256 + $0x18] sm:$0xff]
        %v277 = vld [vmem:[%s256 + $0x20] sm:$0xff]
        %v278 = vld [vmem:[%s256 + $0x28] sm:$0xff]
        %v279 = vld [vmem:[%s256 + $0x30] sm:$0xff]
        %v280 = vld [vmem:[%s256 + $0x38] sm:$0xff]
        %v281 = vld [vmem:[%s256 + $0x40] sm:$0xff]
        %v282 = vld [vmem:[%s256 + $0x48] sm:$0xff]
        %v283 = vld [vmem:[%s256 + $0x50] sm:$0xff]
        %v284 = vld [vmem:[%s256 + $0x58] sm:$0xff]
        %v285 = vld [vmem:[%s256 + $0x60] sm:$0xff]
        %v286 = vld [vmem:[%s256 + $0x68] sm:$0xff]
        %v287 = vld [vmem:[%s256 + $0x70] sm:$0xff]
        %v288 = vld [vmem:[%s256 + $0x78] sm:$0xff]
        %v289 = vld [vmem:[%s2] sm:$0xff]
        %v290 = vld [vmem:[%s2 + $0x8] sm:$0xff]
        %v291 = vld [vmem:[%s2 + $0x10] sm:$0xff]
        %v292 = vld [vmem:[%s2 + $0x18] sm:$0xff]
        %v293 = vld [vmem:[%s3] sm:$0x1]
        %v295 = vlaneseq
        %v296 = vshrl.u32 %v295, 7
        %v297 = vsub.s32 0, %v296
        %v298 = vrot.slane %v293, %v297
        %vm300 = vcmask 261120
        %v302 = vsel %vm300, %v273, 0
        %v305 = vsel %vm300, %v274, 0
        %v308 = vsel %vm300, %v275, 0
        %v311 = vsel %vm300, %v276, 0
        %v314 = vsel %vm300, %v277, 0
        %v317 = vsel %vm300, %v278, 0
        %v320 = vsel %vm300, %v279, 0
        %v323 = vsel %vm300, %v280, 0
        %v326 = vsel %vm300, %v281, 0
        %v329 = vsel %vm300, %v282, 0
        %v332 = vsel %vm300, %v283, 0
        %v335 = vsel %vm300, %v284, 0
        %v338 = vsel %vm300, %v285, 0
        %v341 = vsel %vm300, %v286, 0
        %v344 = vsel %vm300, %v287, 0
        %v347 = vsel %vm300, %v288, 0
        %349 = vmatprep.subr.mxu0 0.0
        %350 = vmatpush1.msra.mxu0 %v289
        %351 = vmatprep.subr.mxu0 0.0
        %352 = vmatpush1.msra.mxu0 %v290
        %353 = vmatprep.subr.mxu0 0.0
        %354 = vmatpush1.msra.mxu0 %v291
        %355 = vmatprep.subr.mxu0 0.0
        %356 = vmatpush1.msra.mxu0 %v292
        %357 = vmatprep.subr.mxu0 0.0
        %358 = vmatpush1.msra.mxu0 0.0
        %359 = vmatprep.subr.mxu0 0.0
        %360 = vmatpush1.msra.mxu0 0.0
        %361 = vmatprep.subr.mxu0 0.0
        %362 = vmatpush1.msra.mxu0 0.0
        %363 = vmatprep.subr.mxu0 0.0
        %364 = vmatpush1.msra.mxu0 0.0
        %365 = vmatprep.subr.mxu0 0.0
        %366 = vmatpush1.msra.mxu0 0.0
        %367 = vmatprep.subr.mxu0 0.0
        %368 = vmatpush1.msra.mxu0 0.0
        %369 = vmatprep.subr.mxu0 0.0
        %370 = vmatpush1.msra.mxu0 0.0
        %371 = vmatprep.subr.mxu0 0.0
        %372 = vmatpush1.msra.mxu0 0.0
        %373 = vmatprep.subr.mxu0 0.0
        %374 = vmatpush1.msra.mxu0 0.0
        %375 = vmatprep.subr.mxu0 0.0
        %376 = vmatpush1.msra.mxu0 0.0
        %377 = vmatprep.subr.mxu0 0.0
        %378 = vmatpush1.msra.mxu0 0.0
        %379 = vmatprep.subr.mxu0 0.0
        %380 = vmatpush1.msra.mxu0 0.0
        %381 = vmatprep.subr.mxu0 0.0
        %382 = vmatpush1.msra.mxu0 0.0
        %383 = vmatprep.subr.mxu0 0.0
        %384 = vmatpush1.msra.mxu0 0.0
        %385 = vmatprep.subr.mxu0 0.0
        %386 = vmatpush1.msra.mxu0 0.0
        %387 = vmatprep.subr.mxu0 0.0
        %388 = vmatpush1.msra.mxu0 0.0
        %389 = vmatprep.subr.mxu0 0.0
        %390 = vmatpush1.msra.mxu0 0.0
        %391 = vmatprep.subr.mxu0 0.0
        %392 = vmatpush1.msra.mxu0 0.0
        %393 = vmatprep.subr.mxu0 0.0
        %394 = vmatpush1.msra.mxu0 0.0
        %395 = vmatprep.subr.mxu0 0.0
        %396 = vmatpush1.msra.mxu0 0.0
        %397 = vmatprep.subr.mxu0 0.0
        %398 = vmatpush1.msra.mxu0 0.0
        %399 = vmatprep.subr.mxu0 0.0
        %400 = vmatpush1.msra.mxu0 0.0
        %401 = vmatprep.subr.mxu0 0.0
        %402 = vmatpush1.msra.mxu0 0.0
        %403 = vmatprep.subr.mxu0 0.0
        %404 = vmatpush1.msra.mxu0 0.0
        %405 = vmatprep.subr.mxu0 0.0
        %406 = vmatpush1.msra.mxu0 0.0
        %407 = vmatprep.subr.mxu0 0.0
        %408 = vmatpush1.msra.mxu0 0.0
        %409 = vmatprep.subr.mxu0 0.0
        %410 = vmatpush1.msra.mxu0 0.0
        %411 = vmatprep.subr.mxu0 0.0
        %412 = vmatpush1.msra.mxu0 0.0
        %413 = vmatprep.mubr.f32.mxu0 0.0
        %414 = vmatmul.mubr.f32.gmra.mrb[0].mxu0 %v302
        %v415 = vpop.f32.mrb[0].mxu0
        %v416 = vadd.f32 %v298, %v415
        %v417 = vpop.f32.mrb[0].mxu0
        %418 = vmatprep.mubr.f32.mxu0 0.0
        %419 = vmatmul.mubr.f32.gmra.mrb[0].mxu0 %v305
        %v420 = vpop.f32.mrb[0].mxu0
        %v421 = vadd.f32 %v298, %v420
        %v422 = vpop.f32.mrb[0].mxu0
        %423 = vmatprep.mubr.f32.mxu0 0.0
        %424 = vmatmul.mubr.f32.gmra.mrb[0].mxu0 %v308
        %v425 = vpop.f32.mrb[0].mxu0
        %v426 = vadd.f32 %v298, %v425
        %v427 = vpop.f32.mrb[0].mxu0
        %428 = vmatprep.mubr.f32.mxu0 0.0
        %429 = vmatmul.mubr.f32.gmra.mrb[0].mxu0 %v311
        %v430 = vpop.f32.mrb[0].mxu0
        %v431 = vadd.f32 %v298, %v430
        %v432 = vpop.f32.mrb[0].mxu0
        %433 = vmatprep.mubr.f32.mxu0 0.0
        %434 = vmatmul.mubr.f32.gmra.mrb[0].mxu0 %v314
        %v435 = vpop.f32.mrb[0].mxu0
        %v436 = vadd.f32 %v298, %v435
        %v437 = vpop.f32.mrb[0].mxu0
        %438 = vmatprep.mubr.f32.mxu0 0.0
        %439 = vmatmul.mubr.f32.gmra.mrb[0].mxu0 %v317
        %v440 = vpop.f32.mrb[0].mxu0
        %v441 = vadd.f32 %v298, %v440
        %v442 = vpop.f32.mrb[0].mxu0
        %443 = vmatprep.mubr.f32.mxu0 0.0
        %444 = vmatmul.mubr.f32.gmra.mrb[0].mxu0 %v320
        %v445 = vpop.f32.mrb[0].mxu0
        %v446 = vadd.f32 %v298, %v445
        %v447 = vpop.f32.mrb[0].mxu0
        %448 = vmatprep.mubr.f32.mxu0 0.0
        %449 = vmatmul.mubr.f32.gmra.mrb[0].mxu0 %v323
        %v450 = vpop.f32.mrb[0].mxu0
        %v451 = vadd.f32 %v298, %v450
        %v452 = vpop.f32.mrb[0].mxu0
        %453 = vmatprep.mubr.f32.mxu0 0.0
        %454 = vmatmul.mubr.f32.gmra.mrb[0].mxu0 %v326
        %v455 = vpop.f32.mrb[0].mxu0
        %v456 = vadd.f32 %v298, %v455
        %v457 = vpop.f32.mrb[0].mxu0
        %458 = vmatprep.mubr.f32.mxu0 0.0
        %459 = vmatmul.mubr.f32.gmra.mrb[0].mxu0 %v329
        %v460 = vpop.f32.mrb[0].mxu0
        %v461 = vadd.f32 %v298, %v460
        %v462 = vpop.f32.mrb[0].mxu0
        %463 = vmatprep.mubr.f32.mxu0 0.0
        %464 = vmatmul.mubr.f32.gmra.mrb[0].mxu0 %v332
        %v465 = vpop.f32.mrb[0].mxu0
        %v466 = vadd.f32 %v298, %v465
        %v467 = vpop.f32.mrb[0].mxu0
        %468 = vmatprep.mubr.f32.mxu0 0.0
        %469 = vmatmul.mubr.f32.gmra.mrb[0].mxu0 %v335
        %v470 = vpop.f32.mrb[0].mxu0
        %v471 = vadd.f32 %v298, %v470
        %v472 = vpop.f32.mrb[0].mxu0
        %473 = vmatprep.mubr.f32.mxu0 0.0
        %474 = vmatmul.mubr.f32.gmra.mrb[0].mxu0 %v338
        %v475 = vpop.f32.mrb[0].mxu0
        %v476 = vadd.f32 %v298, %v475
        %v477 = vpop.f32.mrb[0].mxu0
        %478 = vmatprep.mubr.f32.mxu0 0.0
        %479 = vmatmul.mubr.f32.gmra.mrb[0].mxu0 %v341
        %v480 = vpop.f32.mrb[0].mxu0
        %v481 = vadd.f32 %v298, %v480
        %v482 = vpop.f32.mrb[0].mxu0
        %483 = vmatprep.mubr.f32.mxu0 0.0
        %484 = vmatmul.mubr.f32.gmra.mrb[0].mxu0 %v344
        %v485 = vpop.f32.mrb[0].mxu0
        %v486 = vadd.f32 %v298, %v485
        %v487 = vpop.f32.mrb[0].mxu0
        %488 = vmatprep.mubr.f32.mxu0 0.0
        %489 = vmatmul.mubr.f32.gmra.mrb[0].mxu0 %v347
        %v490 = vpop.f32.mrb[0].mxu0
        %v491 = vadd.f32 %v298, %v490
        %v492 = vpop.f32.mrb[0].mxu0
        %493 = vdwg.mxu0
        %v494 = vmax.f32 %v416, 0.0
        %v495 = vmax.f32 %v421, 0.0
        %v496 = vmax.f32 %v426, 0.0
        %v497 = vmax.f32 %v431, 0.0
        %v498 = vmax.f32 %v436, 0.0
        %v499 = vmax.f32 %v441, 0.0
        %v500 = vmax.f32 %v446, 0.0
        %v501 = vmax.f32 %v451, 0.0
        %v502 = vmax.f32 %v456, 0.0
        %v503 = vmax.f32 %v461, 0.0
        %v504 = vmax.f32 %v466, 0.0
        %v505 = vmax.f32 %v471, 0.0
        %v506 = vmax.f32 %v476, 0.0
        %v507 = vmax.f32 %v481, 0.0
        %v508 = vmax.f32 %v486, 0.0
        %v509 = vmax.f32 %v491, 0.0
        %v510 = vld [vmem:[%s4] sm:$0x1]
        %v512 = vlaneseq
        %v513 = vshrl.u32 %v512, 7
        %v514 = vsub.s32 0, %v513
        %v515 = vrot.slane %v510, %v514
        %v517 = vmul.f32 %v494, %v515
        %v518 = vmul.f32 %v495, %v515
        %v519 = vmul.f32 %v496, %v515
        %v520 = vmul.f32 %v497, %v515
        %v521 = vmul.f32 %v498, %v515
        %v522 = vmul.f32 %v499, %v515
        %v523 = vmul.f32 %v500, %v515
        %v524 = vmul.f32 %v501, %v515
        %v525 = vmul.f32 %v502, %v515
        %v526 = vmul.f32 %v503, %v515
        %v527 = vmul.f32 %v504, %v515
        %v528 = vmul.f32 %v505, %v515
        %v529 = vmul.f32 %v506, %v515
        %v530 = vmul.f32 %v507, %v515
        %v531 = vmul.f32 %v508, %v515
        %v532 = vmul.f32 %v509, %v515
        %vm533 = vcmask 523264
        %v534 = vsel %vm533, %v517, 0.0
        %535 = vadd.xlane.f32.xlu0 %v534
        %v536 = vpop.xlane.xlu0 %535
        %v537 = vsel %vm533, %v518, 0.0
        %538 = vadd.xlane.f32.xlu0 %v537
        %v539 = vpop.xlane.xlu0 %538
        %v540 = vsel %vm533, %v519, 0.0
        %541 = vadd.xlane.f32.xlu0 %v540
        %v542 = vpop.xlane.xlu0 %541
        %v543 = vsel %vm533, %v520, 0.0
        %544 = vadd.xlane.f32.xlu0 %v543
        %v545 = vpop.xlane.xlu0 %544
        %v546 = vsel %vm533, %v521, 0.0
        %547 = vadd.xlane.f32.xlu0 %v546
        %v548 = vpop.xlane.xlu0 %547
        %v549 = vsel %vm533, %v522, 0.0
        %550 = vadd.xlane.f32.xlu0 %v549
        %v551 = vpop.xlane.xlu0 %550
        %v552 = vsel %vm533, %v523, 0.0
        %553 = vadd.xlane.f32.xlu0 %v552
        %v554 = vpop.xlane.xlu0 %553
        %v555 = vsel %vm533, %v524, 0.0
        %556 = vadd.xlane.f32.xlu0 %v555
        %v557 = vpop.xlane.xlu0 %556
        %v558 = vsel %vm533, %v525, 0.0
        %559 = vadd.xlane.f32.xlu0 %v558
        %v560 = vpop.xlane.xlu0 %559
        %v561 = vsel %vm533, %v526, 0.0
        %562 = vadd.xlane.f32.xlu0 %v561
        %v563 = vpop.xlane.xlu0 %562
        %v564 = vsel %vm533, %v527, 0.0
        %565 = vadd.xlane.f32.xlu0 %v564
        %v566 = vpop.xlane.xlu0 %565
        %v567 = vsel %vm533, %v528, 0.0
        %568 = vadd.xlane.f32.xlu0 %v567
        %v569 = vpop.xlane.xlu0 %568
        %v570 = vsel %vm533, %v529, 0.0
        %571 = vadd.xlane.f32.xlu0 %v570
        %v572 = vpop.xlane.xlu0 %571
        %v573 = vsel %vm533, %v530, 0.0
        %574 = vadd.xlane.f32.xlu0 %v573
        %v575 = vpop.xlane.xlu0 %574
        %v576 = vsel %vm533, %v531, 0.0
        %577 = vadd.xlane.f32.xlu0 %v576
        %v578 = vpop.xlane.xlu0 %577
        %v579 = vsel %vm533, %v532, 0.0
        %580 = vadd.xlane.f32.xlu0 %v579
        %v581 = vpop.xlane.xlu0 %580
        %v582 = vld [vmem:[#allocation4] sm:$0x1]
        %v584 = vlaneseq
        %v585 = vshrl.u32 %v584, 7
        %v586 = vsub.s32 0, %v585
        %v587 = vrot.slane %v582, %v586
        %v589 = vadd.f32 %v536, %v587
        %v590 = vadd.f32 %v539, %v587
        %v591 = vadd.f32 %v542, %v587
        %v592 = vadd.f32 %v545, %v587
        %v593 = vadd.f32 %v548, %v587
        %v594 = vadd.f32 %v551, %v587
        %v595 = vadd.f32 %v554, %v587
        %v596 = vadd.f32 %v557, %v587
        %v597 = vadd.f32 %v560, %v587
        %v598 = vadd.f32 %v563, %v587
        %v599 = vadd.f32 %v566, %v587
        %v600 = vadd.f32 %v569, %v587
        %v601 = vadd.f32 %v572, %v587
        %v602 = vadd.f32 %v575, %v587
        %v603 = vadd.f32 %v578, %v587
        %v604 = vadd.f32 %v581, %v587
        %v605 = vld [vmem:[%s262] sm:$0xff]
        %v606 = vld [vmem:[%s262 + $0x8] sm:$0xff]
        %v607 = vld [vmem:[%s262 + $0x10] sm:$0xff]
        %v608 = vld [vmem:[%s262 + $0x18] sm:$0xff]
        %v609 = vld [vmem:[%s262 + $0x20] sm:$0xff]
        %v610 = vld [vmem:[%s262 + $0x28] sm:$0xff]
        %v611 = vld [vmem:[%s262 + $0x30] sm:$0xff]
        %v612 = vld [vmem:[%s262 + $0x38] sm:$0xff]
        %v613 = vld [vmem:[%s262 + $0x40] sm:$0xff]
        %v614 = vld [vmem:[%s262 + $0x48] sm:$0xff]
        %v615 = vld [vmem:[%s262 + $0x50] sm:$0xff]
        %v616 = vld [vmem:[%s262 + $0x58] sm:$0xff]
        %v617 = vld [vmem:[%s262 + $0x60] sm:$0xff]
        %v618 = vld [vmem:[%s262 + $0x68] sm:$0xff]
        %v619 = vld [vmem:[%s262 + $0x70] sm:$0xff]
        %v620 = vld [vmem:[%s262 + $0x78] sm:$0xff]
        %v621 = vlaneseq
        %v622 = vand.u32 %v621, 127
        %623 = vset.pattern.permute.xlu0 0
        %624 = vperm.xlu0 %623, %v605
        %v625 = vpop.permute.xlu0 %624
        %626 = vset.pattern.permute.xlu0 0
        %627 = vperm.xlu0 %626, %v606
        %v628 = vpop.permute.xlu0 %627
        %629 = vset.pattern.permute.xlu0 0
        %630 = vperm.xlu0 %629, %v607
        %v631 = vpop.permute.xlu0 %630
        %632 = vset.pattern.permute.xlu0 0
        %633 = vperm.xlu0 %632, %v608
        %v634 = vpop.permute.xlu0 %633
        %635 = vset.pattern.permute.xlu0 0
        %636 = vperm.xlu0 %635, %v609
        %v637 = vpop.permute.xlu0 %636
        %638 = vset.pattern.permute.xlu0 0
        %639 = vperm.xlu0 %638, %v610
        %v640 = vpop.permute.xlu0 %639
        %641 = vset.pattern.permute.xlu0 0
        %642 = vperm.xlu0 %641, %v611
        %v643 = vpop.permute.xlu0 %642
        %644 = vset.pattern.permute.xlu0 0
        %645 = vperm.xlu0 %644, %v612
        %v646 = vpop.permute.xlu0 %645
        %647 = vset.pattern.permute.xlu0 0
        %648 = vperm.xlu0 %647, %v613
        %v649 = vpop.permute.xlu0 %648
        %650 = vset.pattern.permute.xlu0 0
        %651 = vperm.xlu0 %650, %v614
        %v652 = vpop.permute.xlu0 %651
        %653 = vset.pattern.permute.xlu0 0
        %654 = vperm.xlu0 %653, %v615
        %v655 = vpop.permute.xlu0 %654
        %656 = vset.pattern.permute.xlu0 0
        %657 = vperm.xlu0 %656, %v616
        %v658 = vpop.permute.xlu0 %657
        %659 = vset.pattern.permute.xlu0 0
        %660 = vperm.xlu0 %659, %v617
        %v661 = vpop.permute.xlu0 %660
        %662 = vset.pattern.permute.xlu0 0
        %663 = vperm.xlu0 %662, %v618
        %v664 = vpop.permute.xlu0 %663
        %665 = vset.pattern.permute.xlu0 0
        %666 = vperm.xlu0 %665, %v619
        %v667 = vpop.permute.xlu0 %666
        %668 = vset.pattern.permute.xlu0 0
        %669 = vperm.xlu0 %668, %v620
        %v670 = vpop.permute.xlu0 %669
        %vm671 = vcmp.eq.s32.totalorder %v622, %v625
        %vm672 = vcmp.eq.s32.totalorder %v622, %v628
        %vm673 = vcmp.eq.s32.totalorder %v622, %v631
        %vm674 = vcmp.eq.s32.totalorder %v622, %v634
        %vm675 = vcmp.eq.s32.totalorder %v622, %v637
        %vm676 = vcmp.eq.s32.totalorder %v622, %v640
        %vm677 = vcmp.eq.s32.totalorder %v622, %v643
        %vm678 = vcmp.eq.s32.totalorder %v622, %v646
        %vm679 = vcmp.eq.s32.totalorder %v622, %v649
        %vm680 = vcmp.eq.s32.totalorder %v622, %v652
        %vm681 = vcmp.eq.s32.totalorder %v622, %v655
        %vm682 = vcmp.eq.s32.totalorder %v622, %v658
        %vm683 = vcmp.eq.s32.totalorder %v622, %v661
        %vm684 = vcmp.eq.s32.totalorder %v622, %v664
        %vm685 = vcmp.eq.s32.totalorder %v622, %v667
        %vm686 = vcmp.eq.s32.totalorder %v622, %v670
        %v687 = vsel %vm671, 1, 0
        %v688 = vsel %vm672, 1, 0
        %v689 = vsel %vm673, 1, 0
        %v690 = vsel %vm674, 1, 0
        %v691 = vsel %vm675, 1, 0
        %v692 = vsel %vm676, 1, 0
        %v693 = vsel %vm677, 1, 0
        %v694 = vsel %vm678, 1, 0
        %v695 = vsel %vm679, 1, 0
        %v696 = vsel %vm680, 1, 0
        %v697 = vsel %vm681, 1, 0
        %v698 = vsel %vm682, 1, 0
        %v699 = vsel %vm683, 1, 0
        %v700 = vsel %vm684, 1, 0
        %v701 = vsel %vm685, 1, 0
        %v702 = vsel %vm686, 1, 0
        %v703 = vcvt.s32.f32 %v687
        %v704 = vcvt.s32.f32 %v688
        %v705 = vcvt.s32.f32 %v689
        %v706 = vcvt.s32.f32 %v690
        %v707 = vcvt.s32.f32 %v691
        %v708 = vcvt.s32.f32 %v692
        %v709 = vcvt.s32.f32 %v693
        %v710 = vcvt.s32.f32 %v694
        %v711 = vcvt.s32.f32 %v695
        %v712 = vcvt.s32.f32 %v696
        %v713 = vcvt.s32.f32 %v697
        %v714 = vcvt.s32.f32 %v698
        %v715 = vcvt.s32.f32 %v699
        %v716 = vcvt.s32.f32 %v700
        %v717 = vcvt.s32.f32 %v701
        %v718 = vcvt.s32.f32 %v702
        %720 = vset.pattern.permute.xlu0 0
        %721 = vperm.xlu0 %720, %v589
        %v722 = vpop.permute.xlu0 %721
        %725 = vset.pattern.permute.xlu0 0
        %726 = vperm.xlu0 %725, %v590
        %v727 = vpop.permute.xlu0 %726
        %730 = vset.pattern.permute.xlu0 0
        %731 = vperm.xlu0 %730, %v591
        %v732 = vpop.permute.xlu0 %731
        %735 = vset.pattern.permute.xlu0 0
        %736 = vperm.xlu0 %735, %v592
        %v737 = vpop.permute.xlu0 %736
        %740 = vset.pattern.permute.xlu0 0
        %741 = vperm.xlu0 %740, %v593
        %v742 = vpop.permute.xlu0 %741
        %745 = vset.pattern.permute.xlu0 0
        %746 = vperm.xlu0 %745, %v594
        %v747 = vpop.permute.xlu0 %746
        %750 = vset.pattern.permute.xlu0 0
        %751 = vperm.xlu0 %750, %v595
        %v752 = vpop.permute.xlu0 %751
        %755 = vset.pattern.permute.xlu0 0
        %756 = vperm.xlu0 %755, %v596
        %v757 = vpop.permute.xlu0 %756
        %760 = vset.pattern.permute.xlu0 0
        %761 = vperm.xlu0 %760, %v597
        %v762 = vpop.permute.xlu0 %761
        %765 = vset.pattern.permute.xlu0 0
        %766 = vperm.xlu0 %765, %v598
        %v767 = vpop.permute.xlu0 %766
        %770 = vset.pattern.permute.xlu0 0
        %771 = vperm.xlu0 %770, %v599
        %v772 = vpop.permute.xlu0 %771
        %775 = vset.pattern.permute.xlu0 0
        %776 = vperm.xlu0 %775, %v600
        %v777 = vpop.permute.xlu0 %776
        %780 = vset.pattern.permute.xlu0 0
        %781 = vperm.xlu0 %780, %v601
        %v782 = vpop.permute.xlu0 %781
        %785 = vset.pattern.permute.xlu0 0
        %786 = vperm.xlu0 %785, %v602
        %v787 = vpop.permute.xlu0 %786
        %790 = vset.pattern.permute.xlu0 0
        %791 = vperm.xlu0 %790, %v603
        %v792 = vpop.permute.xlu0 %791
        %795 = vset.pattern.permute.xlu0 0
        %796 = vperm.xlu0 %795, %v604
        %v797 = vpop.permute.xlu0 %796
        %v799 = vsel %vm671, %v722, -1e+30
        %v800 = vsel %vm672, %v727, -1e+30
        %v801 = vsel %vm673, %v732, -1e+30
        %v802 = vsel %vm674, %v737, -1e+30
        %v803 = vsel %vm675, %v742, -1e+30
        %v804 = vsel %vm676, %v747, -1e+30
        %v805 = vsel %vm677, %v752, -1e+30
        %v806 = vsel %vm678, %v757, -1e+30
        %v807 = vsel %vm679, %v762, -1e+30
        %v808 = vsel %vm680, %v767, -1e+30
        %v809 = vsel %vm681, %v772, -1e+30
        %v810 = vsel %vm682, %v777, -1e+30
        %v811 = vsel %vm683, %v782, -1e+30
        %v812 = vsel %vm684, %v787, -1e+30
        %v813 = vsel %vm685, %v792, -1e+30
        %v814 = vsel %vm686, %v797, -1e+30
        %vm815 = vcmask 64512
        %v816 = vsel %vm815, %v799, -inf
        %v817 = vsel %vm815, %v800, -inf
        %v818 = vsel %vm815, %v801, -inf
        %v819 = vsel %vm815, %v802, -inf
        %v820 = vsel %vm815, %v803, -inf
        %v821 = vmax.f32 %v816, %v820
        %v822 = vsel %vm815, %v804, -inf
        %v823 = vmax.f32 %v817, %v822
        %v824 = vsel %vm815, %v805, -inf
        %v825 = vmax.f32 %v818, %v824
        %v826 = vsel %vm815, %v806, -inf
        %v827 = vmax.f32 %v819, %v826
        %v828 = vsel %vm815, %v807, -inf
        %v829 = vmax.f32 %v821, %v828
        %v830 = vsel %vm815, %v808, -inf
        %v831 = vmax.f32 %v823, %v830
        %v832 = vsel %vm815, %v809, -inf
        %v833 = vmax.f32 %v825, %v832
        %v834 = vsel %vm815, %v810, -inf
        %v835 = vmax.f32 %v827, %v834
        %v836 = vsel %vm815, %v811, -inf
        %v837 = vmax.f32 %v829, %v836
        %v838 = vsel %vm815, %v812, -inf
        %v839 = vmax.f32 %v831, %v838
        %v840 = vsel %vm815, %v813, -inf
        %v841 = vmax.f32 %v833, %v840
        %v842 = vsel %vm815, %v814, -inf
        %v843 = vmax.f32 %v835, %v842
        %v844 = vmax.f32 %v837, %v839
        %v845 = vmax.f32 %v841, %v843
        %v846 = vmax.f32 %v844, %v845
        %v847 = vrot.slane %v846, 4
        %v848 = vmax.f32 %v846, %v847
        %v849 = vrot.slane %v848, 2
        %v850 = vmax.f32 %v848, %v849
        %v851 = vrot.slane %v850, 1
        %v852 = vmax.f32 %v850, %v851
        %v853 = vld [vmem:[#allocation3] sm:$0x1]
        %v854 = vmax.f32 %v853, %v852
        %v855 = vsub.f32 %v853, %v854
        %v856 = vmul.f32 %v855, 1.442695
        %v857 = vpow.pop %v856
        %v859 = vlaneseq
        %v860 = vshrl.u32 %v859, 7
        %v861 = vsub.s32 0, %v860
        %v862 = vrot.slane %v854, %v861
        %v864 = vmul.f32 %v703, %v862
        %v865 = vmul.f32 %v704, %v862
        %v866 = vmul.f32 %v705, %v862
        %v867 = vmul.f32 %v706, %v862
        %v868 = vmul.f32 %v707, %v862
        %v869 = vmul.f32 %v708, %v862
        %v870 = vmul.f32 %v709, %v862
        %v871 = vmul.f32 %v710, %v862
        %v872 = vmul.f32 %v711, %v862
        %v873 = vmul.f32 %v712, %v862
        %v874 = vmul.f32 %v713, %v862
        %v875 = vmul.f32 %v714, %v862
        %v876 = vmul.f32 %v715, %v862
        %v877 = vmul.f32 %v716, %v862
        %v878 = vmul.f32 %v717, %v862
        %v879 = vmul.f32 %v718, %v862
        %v880 = vsel %vm815, %v864, 0.0
        %881 = vadd.xlane.f32.xlu0 %v880
        %v882 = vpop.xlane.xlu0 %881
        %v883 = vsel %vm815, %v865, 0.0
        %884 = vadd.xlane.f32.xlu0 %v883
        %v885 = vpop.xlane.xlu0 %884
        %v886 = vsel %vm815, %v866, 0.0
        %887 = vadd.xlane.f32.xlu0 %v886
        %v888 = vpop.xlane.xlu0 %887
        %v889 = vsel %vm815, %v867, 0.0
        %890 = vadd.xlane.f32.xlu0 %v889
        %v891 = vpop.xlane.xlu0 %890
        %v892 = vsel %vm815, %v868, 0.0
        %893 = vadd.xlane.f32.xlu0 %v892
        %v894 = vpop.xlane.xlu0 %893
        %v895 = vsel %vm815, %v869, 0.0
        %896 = vadd.xlane.f32.xlu0 %v895
        %v897 = vpop.xlane.xlu0 %896
        %v898 = vsel %vm815, %v870, 0.0
        %899 = vadd.xlane.f32.xlu0 %v898
        %v900 = vpop.xlane.xlu0 %899
        %v901 = vsel %vm815, %v871, 0.0
        %902 = vadd.xlane.f32.xlu0 %v901
        %v903 = vpop.xlane.xlu0 %902
        %v904 = vsel %vm815, %v872, 0.0
        %905 = vadd.xlane.f32.xlu0 %v904
        %v906 = vpop.xlane.xlu0 %905
        %v907 = vsel %vm815, %v873, 0.0
        %908 = vadd.xlane.f32.xlu0 %v907
        %v909 = vpop.xlane.xlu0 %908
        %v910 = vsel %vm815, %v874, 0.0
        %911 = vadd.xlane.f32.xlu0 %v910
        %v912 = vpop.xlane.xlu0 %911
        %v913 = vsel %vm815, %v875, 0.0
        %914 = vadd.xlane.f32.xlu0 %v913
        %v915 = vpop.xlane.xlu0 %914
        %v916 = vsel %vm815, %v876, 0.0
        %917 = vadd.xlane.f32.xlu0 %v916
        %v918 = vpop.xlane.xlu0 %917
        %v919 = vsel %vm815, %v877, 0.0
        %920 = vadd.xlane.f32.xlu0 %v919
        %v921 = vpop.xlane.xlu0 %920
        %v922 = vsel %vm815, %v878, 0.0
        %923 = vadd.xlane.f32.xlu0 %v922
        %v924 = vpop.xlane.xlu0 %923
        %v925 = vsel %vm815, %v879, 0.0
        %926 = vadd.xlane.f32.xlu0 %v925
        %v927 = vpop.xlane.xlu0 %926
        %v928 = vsub.f32 %v589, %v882
        %v929 = vsub.f32 %v590, %v885
        %v930 = vsub.f32 %v591, %v888
        %v931 = vsub.f32 %v592, %v891
        %v932 = vsub.f32 %v593, %v894
        %v933 = vsub.f32 %v594, %v897
        %v934 = vsub.f32 %v595, %v900
        %v935 = vsub.f32 %v596, %v903
        %v936 = vsub.f32 %v597, %v906
        %v937 = vsub.f32 %v598, %v909
        %v938 = vsub.f32 %v599, %v912
        %v939 = vsub.f32 %v600, %v915
        %v940 = vsub.f32 %v601, %v918
        %v941 = vsub.f32 %v602, %v921
        %v942 = vsub.f32 %v603, %v924
        %v943 = vsub.f32 %v604, %v927
        %v944 = vmul.f32 %v928, 1.442695
        %v945 = vpow.pop %v944
        %v946 = vmul.f32 %v929, 1.442695
        %v947 = vpow.pop %v946
        %v948 = vmul.f32 %v930, 1.442695
        %v949 = vpow.pop %v948
        %v950 = vmul.f32 %v931, 1.442695
        %v951 = vpow.pop %v950
        %v952 = vmul.f32 %v932, 1.442695
        %v953 = vpow.pop %v952
        %v954 = vmul.f32 %v933, 1.442695
        %v955 = vpow.pop %v954
        %v956 = vmul.f32 %v934, 1.442695
        %v957 = vpow.pop %v956
        %v958 = vmul.f32 %v935, 1.442695
        %v959 = vpow.pop %v958
        %v960 = vmul.f32 %v936, 1.442695
        %v961 = vpow.pop %v960
        %v962 = vmul.f32 %v937, 1.442695
        %v963 = vpow.pop %v962
        %v964 = vmul.f32 %v938, 1.442695
        %v965 = vpow.pop %v964
        %v966 = vmul.f32 %v939, 1.442695
        %v967 = vpow.pop %v966
        %v968 = vmul.f32 %v940, 1.442695
        %v969 = vpow.pop %v968
        %v970 = vmul.f32 %v941, 1.442695
        %v971 = vpow.pop %v970
        %v972 = vmul.f32 %v942, 1.442695
        %v973 = vpow.pop %v972
        %v974 = vmul.f32 %v943, 1.442695
        %v975 = vpow.pop %v974
        %977 = vset.pattern.permute.xlu0 0
        %978 = vperm.xlu0 %977, %v945
        %v979 = vpop.permute.xlu0 %978
        %982 = vset.pattern.permute.xlu0 0
        %983 = vperm.xlu0 %982, %v947
        %v984 = vpop.permute.xlu0 %983
        %987 = vset.pattern.permute.xlu0 0
        %988 = vperm.xlu0 %987, %v949
        %v989 = vpop.permute.xlu0 %988
        %992 = vset.pattern.permute.xlu0 0
        %993 = vperm.xlu0 %992, %v951
        %v994 = vpop.permute.xlu0 %993
        %997 = vset.pattern.permute.xlu0 0
        %998 = vperm.xlu0 %997, %v953
        %v999 = vpop.permute.xlu0 %998
        %1002 = vset.pattern.permute.xlu0 0
        %1003 = vperm.xlu0 %1002, %v955
        %v1004 = vpop.permute.xlu0 %1003
        %1007 = vset.pattern.permute.xlu0 0
        %1008 = vperm.xlu0 %1007, %v957
        %v1009 = vpop.permute.xlu0 %1008
        %1012 = vset.pattern.permute.xlu0 0
        %1013 = vperm.xlu0 %1012, %v959
        %v1014 = vpop.permute.xlu0 %1013
        %1017 = vset.pattern.permute.xlu0 0
        %1018 = vperm.xlu0 %1017, %v961
        %v1019 = vpop.permute.xlu0 %1018
        %1022 = vset.pattern.permute.xlu0 0
        %1023 = vperm.xlu0 %1022, %v963
        %v1024 = vpop.permute.xlu0 %1023
        %1027 = vset.pattern.permute.xlu0 0
        %1028 = vperm.xlu0 %1027, %v965
        %v1029 = vpop.permute.xlu0 %1028
        %1032 = vset.pattern.permute.xlu0 0
        %1033 = vperm.xlu0 %1032, %v967
        %v1034 = vpop.permute.xlu0 %1033
        %1037 = vset.pattern.permute.xlu0 0
        %1038 = vperm.xlu0 %1037, %v969
        %v1039 = vpop.permute.xlu0 %1038
        %1042 = vset.pattern.permute.xlu0 0
        %1043 = vperm.xlu0 %1042, %v971
        %v1044 = vpop.permute.xlu0 %1043
        %1047 = vset.pattern.permute.xlu0 0
        %1048 = vperm.xlu0 %1047, %v973
        %v1049 = vpop.permute.xlu0 %1048
        %1052 = vset.pattern.permute.xlu0 0
        %1053 = vperm.xlu0 %1052, %v975
        %v1054 = vpop.permute.xlu0 %1053
        %v1056 = vmul.f32 %v703, %v979
        %v1057 = vmul.f32 %v704, %v984
        %v1058 = vmul.f32 %v705, %v989
        %v1059 = vmul.f32 %v706, %v994
        %v1060 = vmul.f32 %v707, %v999
        %v1061 = vmul.f32 %v708, %v1004
        %v1062 = vmul.f32 %v709, %v1009
        %v1063 = vmul.f32 %v710, %v1014
        %v1064 = vmul.f32 %v711, %v1019
        %v1065 = vmul.f32 %v712, %v1024
        %v1066 = vmul.f32 %v713, %v1029
        %v1067 = vmul.f32 %v714, %v1034
        %v1068 = vmul.f32 %v715, %v1039
        %v1069 = vmul.f32 %v716, %v1044
        %v1070 = vmul.f32 %v717, %v1049
        %v1071 = vmul.f32 %v718, %v1054
        %1072 = vxpose.xlu0.b32.start [1/16] %v1056, 128
        %1073 = vxpose.xlu0.b32.cont [2/16] %v1057, 128
        %1074 = vxpose.xlu0.b32.cont [3/16] %v1058, 128
        %1075 = vxpose.xlu0.b32.cont [4/16] %v1059, 128
        %1076 = vxpose.xlu0.b32.cont [5/16] %v1060, 128
        %1077 = vxpose.xlu0.b32.cont [6/16] %v1061, 128
        %1078 = vxpose.xlu0.b32.cont [7/16] %v1062, 128
        %1079 = vxpose.xlu0.b32.cont [8/16] %v1063, 128
        %1080 = vxpose.xlu0.b32.cont [9/16] %v1064, 128
        %1081 = vxpose.xlu0.b32.cont [10/16] %v1065, 128
        %1082 = vxpose.xlu0.b32.cont [11/16] %v1066, 128
        %1083 = vxpose.xlu0.b32.cont [12/16] %v1067, 128
        %1084 = vxpose.xlu0.b32.cont [13/16] %v1068, 128
        %1085 = vxpose.xlu0.b32.cont [14/16] %v1069, 128
        %1086 = vxpose.xlu0.b32.cont [15/16] %v1070, 128
        %1087 = vxpose.xlu0.b32.end [16/16] %v1071, 128
        %v1088 = vpop.trf.xlu0
        %v1089 = vpop.trf.xlu0
        %v1090 = vpop.trf.xlu0
        %v1091 = vpop.trf.xlu0
        %v1092 = vpop.trf.xlu0
        %v1093 = vpop.trf.xlu0
        %v1094 = vpop.trf.xlu0
        %v1095 = vpop.trf.xlu0
        %v1096 = vpop.trf.xlu0
        %v1097 = vpop.trf.xlu0
        %v1098 = vpop.trf.xlu0
        %v1099 = vpop.trf.xlu0
        %v1100 = vpop.trf.xlu0
        %v1101 = vpop.trf.xlu0
        %v1102 = vpop.trf.xlu0
        %v1103 = vpop.trf.xlu0
        %1104 = vmatprep.subr.mxu0 0.0
        %1105 = vmatpush1.msra.mxu0 %v273
        %1106 = vmatprep.subr.mxu0 0.0
        %1107 = vmatpush1.msra.mxu0 %v274
        %1108 = vmatprep.subr.mxu0 0.0
        %1109 = vmatpush1.msra.mxu0 %v275
        %1110 = vmatprep.subr.mxu0 0.0
        %1111 = vmatpush1.msra.mxu0 %v276
        %1112 = vmatprep.subr.mxu0 0.0
        %1113 = vmatpush1.msra.mxu0 %v277
        %1114 = vmatprep.subr.mxu0 0.0
        %1115 = vmatpush1.msra.mxu0 %v278
        %1116 = vmatprep.subr.mxu0 0.0
        %1117 = vmatpush1.msra.mxu0 %v279
        %1118 = vmatprep.subr.mxu0 0.0
        %1119 = vmatpush1.msra.mxu0 %v280
        %1120 = vmatprep.subr.mxu0 0.0
        %1121 = vmatpush1.msra.mxu0 %v281
        %1122 = vmatprep.subr.mxu0 0.0
        %1123 = vmatpush1.msra.mxu0 %v282
        %1124 = vmatprep.subr.mxu0 0.0
        %1125 = vmatpush1.msra.mxu0 %v283
        %1126 = vmatprep.subr.mxu0 0.0
        %1127 = vmatpush1.msra.mxu0 %v284
        %1128 = vmatprep.subr.mxu0 0.0
        %1129 = vmatpush1.msra.mxu0 %v285
        %1130 = vmatprep.subr.mxu0 0.0
        %1131 = vmatpush1.msra.mxu0 %v286
        %1132 = vmatprep.subr.mxu0 0.0
        %1133 = vmatpush1.msra.mxu0 %v287
        %1134 = vmatprep.subr.mxu0 0.0
        %1135 = vmatpush1.msra.mxu0 %v288
        %1136 = vmatprep.subr.mxu0 0.0
        %1137 = vmatpush1.msra.mxu0 0.0
        %1138 = vmatprep.subr.mxu0 0.0
        %1139 = vmatpush1.msra.mxu0 0.0
        %1140 = vmatprep.subr.mxu0 0.0
        %1141 = vmatpush1.msra.mxu0 0.0
        %1142 = vmatprep.subr.mxu0 0.0
        %1143 = vmatpush1.msra.mxu0 0.0
        %1144 = vmatprep.subr.mxu0 0.0
        %1145 = vmatpush1.msra.mxu0 0.0
        %1146 = vmatprep.subr.mxu0 0.0
        %1147 = vmatpush1.msra.mxu0 0.0
        %1148 = vmatprep.subr.mxu0 0.0
        %1149 = vmatpush1.msra.mxu0 0.0
        %1150 = vmatprep.subr.mxu0 0.0
        %1151 = vmatpush1.msra.mxu0 0.0
        %1152 = vmatprep.subr.mxu0 0.0
        %1153 = vmatpush1.msra.mxu0 0.0
        %1154 = vmatprep.subr.mxu0 0.0
        %1155 = vmatpush1.msra.mxu0 0.0
        %1156 = vmatprep.subr.mxu0 0.0
        %1157 = vmatpush1.msra.mxu0 0.0
        %1158 = vmatprep.subr.mxu0 0.0
        %1159 = vmatpush1.msra.mxu0 0.0
        %1160 = vmatprep.subr.mxu0 0.0
        %1161 = vmatpush1.msra.mxu0 0.0
        %1162 = vmatprep.subr.mxu0 0.0
        %1163 = vmatpush1.msra.mxu0 0.0
        %1164 = vmatprep.subr.mxu0 0.0
        %1165 = vmatpush1.msra.mxu0 0.0
        %1166 = vmatprep.subr.mxu0 0.0
        %1167 = vmatpush1.msra.mxu0 0.0
        %1168 = vmatprep.mubr.f32.mxu0 0.0
        %1169 = vmatmul.mubr.f32.gmra.mrb[0].mxu0 %v1088
        %v1170 = vpop.f32.mrb[0].mxu0
        %v1171 = vadd.f32 0.0, %v1170
        %v1172 = vpop.f32.mrb[0].mxu0
        %1173 = vdwg.mxu0
        %v1174 = vsel %vm815, %v1056, 0.0
        %v1175 = vsel %vm815, %v1057, 0.0
        %v1176 = vadd.f32 %v1174, %v1175
        %v1177 = vsel %vm815, %v1058, 0.0
        %v1178 = vadd.f32 %v1176, %v1177
        %v1179 = vsel %vm815, %v1059, 0.0
        %v1180 = vadd.f32 %v1178, %v1179
        %v1181 = vsel %vm815, %v1060, 0.0
        %v1182 = vadd.f32 %v1180, %v1181
        %v1183 = vsel %vm815, %v1061, 0.0
        %v1184 = vadd.f32 %v1182, %v1183
        %v1185 = vsel %vm815, %v1062, 0.0
        %v1186 = vadd.f32 %v1184, %v1185
        %v1187 = vsel %vm815, %v1063, 0.0
        %v1188 = vadd.f32 %v1186, %v1187
        %v1189 = vsel %vm815, %v1064, 0.0
        %v1190 = vadd.f32 %v1188, %v1189
        %v1191 = vsel %vm815, %v1065, 0.0
        %v1192 = vadd.f32 %v1190, %v1191
        %v1193 = vsel %vm815, %v1066, 0.0
        %v1194 = vadd.f32 %v1192, %v1193
        %v1195 = vsel %vm815, %v1067, 0.0
        %v1196 = vadd.f32 %v1194, %v1195
        %v1197 = vsel %vm815, %v1068, 0.0
        %v1198 = vadd.f32 %v1196, %v1197
        %v1199 = vsel %vm815, %v1069, 0.0
        %v1200 = vadd.f32 %v1198, %v1199
        %v1201 = vsel %vm815, %v1070, 0.0
        %v1202 = vadd.f32 %v1200, %v1201
        %v1203 = vsel %vm815, %v1071, 0.0
        %v1204 = vadd.f32 %v1202, %v1203
        %v1205 = vrot.slane %v1204, 4
        %v1206 = vadd.f32 %v1204, %v1205
        %v1207 = vrot.slane %v1206, 2
        %v1208 = vadd.f32 %v1206, %v1207
        %v1209 = vrot.slane %v1208, 1
        %v1210 = vadd.f32 %v1208, %v1209
        %v1211 = vlaneseq
        %v1212 = vshrl.u32 %v1211, 7
        %vm1213 = vcmp.eq.s32.totalorder %v1212, %v622
        %v1214 = vsel %vm1213, 1, 0
        %v1215 = vcvt.s32.f32 %v1214
        %v1217 = vlaneseq
        %v1218 = vshrl.u32 %v1217, 7
        %v1219 = vsub.s32 0, %v1218
        %v1220 = vrot.slane %v857, %v1219
        %v1222 = vmul.f32 %v1215, %v1220
        %v1223 = vsel %vm815, %v1222, 0.0
        %1224 = vadd.xlane.f32.xlu0 %v1223
        %v1225 = vpop.xlane.xlu0 %1224
        %v1226 = vld [vmem:[#allocation5] sm:$0xff]
        %v1227 = vmul.f32 %v1226, %v1225
        %v1228 = vadd.f32 %v1227, %v1171
        %1229 = vst.msk [vmem:[#allocation5] sm:$0xff] %vm300, %v1228
        %v1230 = vld [vmem:[#allocation2] sm:$0x1]
        %v1231 = vmul.f32 %v1230, %v857
        %v1232 = vadd.f32 %v1231, %v1210
        %vm1233 = vcmask 57344
        %1234 = vst.msk [vmem:[#allocation2] sm:$0x1] %vm1233, %v1232
        %1235 = vst.msk [vmem:[#allocation3] sm:$0x1] %vm1233, %v854
        %p1236 = scmp.eq.s32.totalorder %s20, 1
        // Predicated region
        $region49: #{tpu_custom_call.1} parent=43 // pred_check
          %p1237 = pneg %p1236
        $region50: #{tpu_custom_call.1} parent=43 // pred_check_branch
          %1239 = sbr.rel (%p1237) target = $region52
        $region51: #{tpu_custom_call.1} parent=43 // pred_region
          %v1240 = vld [vmem:[#allocation2] sm:$0x1]
          %v1242 = vlaneseq
          %v1243 = vshrl.u32 %v1242, 7
          %v1244 = vsub.s32 0, %v1243
          %v1245 = vrot.slane %v1240, %v1244
          %v1247 = vmul.f32 %v1215, %v1245
          %v1248 = vsel %vm815, %v1247, 0.0
          %1249 = vadd.xlane.f32.xlu0 %v1248
          %v1250 = vpop.xlane.xlu0 %1249
          %v1251 = vld [vmem:[#allocation5] sm:$0xff]
          %v1252 = vrcp.pop %v1250
          %v1253 = vmul.f32 %v1251, %v1252
          %1254 = vst.msk [vmem:[#allocation5] sm:$0xff] %vm300, %v1253
        $region52: #{tpu_custom_call.1} parent=43 // pred_fallthru
          _
        // Predicated region
        $region53: #{tpu_custom_call.1} parent=43 // pred_check
          %p1255 = pneg %p169
        $region54: #{tpu_custom_call.1} parent=43 // pred_check_branch
          %1257 = sbr.rel (%p1255) target = $region56
        $region55: #{tpu_custom_call.1} parent=43 // pred_region
          %s1259 = ssub.s32 128, 128
          %1260 = vsyncadd [#allocation6], %s1259
          %s1262 = sshll.u32 [#allocation5], 4
          %s1263 = int_to_ptr.vmem [resolvable:$true] %s1262
          %1265 = dma.vmem_to_hbm [thread:$0]  %s1263, 128, %s6, [#allocation6]
        $region56: #{tpu_custom_call.1} parent=43 // pred_fallthru
          _
        // Predicated region
        $region57: #{tpu_custom_call.1} parent=43 // pred_check
          %p1266 = pneg %p169
        $region58: #{tpu_custom_call.1} parent=43 // pred_check_branch
          %1268 = sbr.rel (%p1266) target = $region60
        $region59: #{tpu_custom_call.1} parent=43 // pred_region
          %1269 = dma.done [#allocation6], 128
        $region60: #{tpu_custom_call.1} parent=43 // pred_fallthru
          _
      $region44: #{tpu_custom_call.1} parent=5 // pred_fallthru
        _
      %p1270 = scmp.le.s32.totalorder 2, %s15
      // Predicated region
      $region61: #{tpu_custom_call.1} parent=5 // pred_check
        %p1271 = pneg %p1270
      $region62: #{tpu_custom_call.1} parent=5 // pred_check_branch
        %1273 = sbr.rel (%p1271) target = $region64
      $region63: #{tpu_custom_call.1} parent=5 // pred_region
        %s1274 = ssub.s32 %s15, 2
      $region64: #{tpu_custom_call.1} parent=5 // pred_fallthru
        _
    $region6: #{tpu_custom_call.1} parent=1 // loop_footer
      %s19 = sadd.s32 1, %s15
    $region7: #{tpu_custom_call.1} parent=1 // loop_footer_branch
      %14 = sbr.rel target = $region3
    $region8: #{tpu_custom_call.1} parent=1 // loop_exit
      _
    %1275 = vsyncpa [#allocation6], 1
    %s1276 = scalar_lea.sflag [#allocation6], 1
    %1277 = vsyncpa %s1276, 1

</llo_original>
